<compile_context>
chip_gen: v5e
topology: v5e:2x2
jax: 0.10.0
libtpu: 0.0.40
codegen_flags: <defaults>
</compile_context>

<pallas_src>
import jax
import jax.numpy as jnp
import numpy as np
from jax import lax
from jax.experimental import pallas as pl
from jax.experimental.pallas import tpu as pltpu


# ----------------------------- mixing matrix ---------------------------------
def _haar_mix_matrix(W):
    """(2W, 2W) f32 matrix folding the grouped 2x2/stride-2 Haar conv (incl. /4).

    Input lane  p = r*W + w       (r = row inside the 2-row pair, w = column)
    Output lane q = k*(W//2) + j  (k = Haar component, j = output column)
    """
    haar = np.ones((4, 2, 2), np.float32)
    haar[1, 0, 1] = -1.0
    haar[1, 1, 1] = -1.0
    haar[2, 1, 0] = -1.0
    haar[2, 1, 1] = -1.0
    haar[3, 1, 0] = -1.0
    haar[3, 0, 1] = -1.0
    W2 = W // 2
    m = np.zeros((2 * W, 2 * W), np.float32)
    for k in range(4):
        for j in range(W2):
            for r in range(2):
                for s in range(2):
                    m[r * W + 2 * j + s, k * W2 + j] = haar[k, r, s] / 4.0
    return jnp.asarray(m)


# --------------------------------- kernel ------------------------------------
def _haar_dwn_kernel(x_ref, m_ref, o_ref):
    # x_ref: (C*H/2, 2W)   one image; each sublane = one (channel, 2-row band)
    # m_ref: (2W, 2W)      fixed Haar mixing matrix (includes the /4)
    # o_ref: (4, C*H/2, W/2)
    y = jnp.dot(x_ref[...], m_ref[...], preferred_element_type=jnp.float32)
    w2 = o_ref.shape[2]
    for k in range(4):                       # 4 contiguous lane-slice stores
        o_ref[k] = y[:, k * w2:(k + 1) * w2]


# -------------------------------- wrapper -------------------------------------
def haar_downsampling_forward(x_nchw, calc_jac=False):
    """HaarDownsampling.forward(x, rev=False)."""
    B, C, H, W = x_nchw.shape
    assert H % 2 == 0 and W % 2 == 0
    H2, W2 = H // 2, W // 2
    CH2 = C * H2

    # Free reshape: (B, C, H, W) -> (B, C*H/2, 2*W); lane p = r*W + w.
    x_pairs = x_nchw.astype(jnp.float32).reshape(B, CH2, 2 * W)
    mix = _haar_mix_matrix(W)

    out = pl.pallas_call(
        _haar_dwn_kernel,
        out_shape=jax.ShapeDtypeStruct((B, 4, CH2, W2), jnp.float32),
        grid_spec=pltpu.PrefetchScalarGridSpec(
            num_scalar_prefetch=0,
            grid=(B,),
            in_specs=[
                pl.BlockSpec((None, CH2, 2 * W), lambda b: (b, 0, 0)),   # x
                pl.BlockSpec((2 * W, 2 * W), lambda b: (0, 0)),          # mix
            ],
            out_specs=pl.BlockSpec((None, 4, CH2, W2),
                                   lambda b: (b, 0, 0, 0)),
        ),
        compiler_params=pltpu.CompilerParams(
            dimension_semantics=("parallel",)),
    )(x_pairs, mix)

    # Free reshape: (B, 4, C*H/2, W/2) -> (B, 4*C, H/2, W/2), channel = k*C + c.
    out = out.reshape(B, 4 * C, H2, W2)
    if calc_jac:
        return out, 1
    return out


# ------------------------- pure-JAX reference ---------------------------------
def haar_downsampling_ref(x_nchw):
    """Literal JAX port of the PyTorch forward (rev=False)."""
    B, C, H, W = x_nchw.shape
    hw = np.ones((4, 1, 2, 2), np.float32)
    hw[1, 0, 0, 1] = -1.0
    hw[1, 0, 1, 1] = -1.0
    hw[2, 0, 1, 0] = -1.0
    hw[2, 0, 1, 1] = -1.0
    hw[3, 0, 1, 0] = -1.0
    hw[3, 0, 0, 1] = -1.0
    hw = np.concatenate([hw] * C, axis=0)                       # (4C, 1, 2, 2)
    out = lax.conv_general_dilated(
        x_nchw.astype(jnp.float32), jnp.asarray(hw),
        window_strides=(2, 2), padding='VALID',
        dimension_numbers=('NCHW', 'OIHW', 'NCHW'),
        feature_group_count=C) / 4.0
    out = out.reshape(B, C, 4, H // 2, W // 2)
    out = jnp.transpose(out, (0, 2, 1, 3, 4))
    return out.reshape(B, 4 * C, H // 2, W // 2)


# ---------------------------------- main --------------------------------------
if __name__ == "__main__":
    B, C, H, W = 2, 4, 16, 16
    key = jax.random.PRNGKey(0)
    x = jax.random.normal(key, (B, C, H, W), dtype=jnp.float32)

    y = jax.block_until_ready(haar_downsampling_forward(x))
    y_ref = jax.block_until_ready(haar_downsampling_ref(x))

    assert y.shape == (B, 4 * C, H // 2, W // 2), y.shape
    np.testing.assert_allclose(np.asarray(y), np.asarray(y_ref),
                               rtol=2e-5, atol=2e-5)
    print("KERNEL_OK")
</pallas_src>

<mosaic_0001>
module attributes {stable_mosaic.version = 11 : i64} {
  func.func @_haar_dwn_kernel(%arg0: i32, %arg1: memref<1x32x32xf32, #tpu.memory_space<vmem>>, %arg2: memref<32x32xf32, #tpu.memory_space<vmem>>, %arg3: memref<1x4x32x8xf32, #tpu.memory_space<vmem>>) attributes {dimension_semantics = [#tpu.dimension_semantics<parallel>], iteration_bounds = array<i64: 2>, scalar_prefetch = 0 : i64, scratch_operands = 0 : i64, tpu.core_type = #tpu.core_type<tc>, window_params = [{transform_indices = @transform_0, window_bounds = array<i64: 1, 32, 32>}, {pipeline_mode = #tpu.pipeline_mode<synchronous>, transform_indices = @transform_1, window_bounds = array<i64: 32, 32>}, {transform_indices = @transform_2, window_bounds = array<i64: 1, 4, 32, 8>}]} {
    %c0 = arith.constant 0 : index
    %c0_0 = arith.constant 0 : index
    %c0_1 = arith.constant 0 : index
    %0 = vector.load %arg1[%c0, %c0_0, %c0_1] : memref<1x32x32xf32, #tpu.memory_space<vmem>>, vector<1x32x32xf32>
    %1 = vector.shape_cast %0 : vector<1x32x32xf32> to vector<32x32xf32>
    %c0_2 = arith.constant 0 : index
    %c0_3 = arith.constant 0 : index
    %2 = vector.load %arg2[%c0_2, %c0_3] : memref<32x32xf32, #tpu.memory_space<vmem>>, vector<32x32xf32>
    %cst = arith.constant dense<0.000000e+00> : vector<32x32xf32>
    %3 = tpu.matmul %1, %2, %cst {dimension_numbers = #tpu.dot_dimension_numbers<[1], [0], [0], [1], [0, 0, 1, 1], [], []>} : vector<32x32xf32>, vector<32x32xf32>, vector<32x32xf32> -> vector<32x32xf32>
    %4 = vector.extract_strided_slice %3 {offsets = [0, 0], sizes = [32, 8], strides = [1, 1]} : vector<32x32xf32> to vector<32x8xf32>
    %c0_4 = arith.constant 0 : index
    %c0_5 = arith.constant 0 : index
    %c0_6 = arith.constant 0 : index
    %c0_7 = arith.constant 0 : index
    %5 = vector.load %arg3[%c0_4, %c0_5, %c0_6, %c0_7] : memref<1x4x32x8xf32, #tpu.memory_space<vmem>>, vector<1x1x32x8xf32>
    %6 = vector.shape_cast %5 : vector<1x1x32x8xf32> to vector<32x8xf32>
    %7 = vector.shape_cast %4 : vector<32x8xf32> to vector<1x1x32x8xf32>
    tpu.vector_store %arg3[%c0_4, %c0_5, %c0_6, %c0_7], %7 {strides = array<i32>} : memref<1x4x32x8xf32, #tpu.memory_space<vmem>>, vector<1x1x32x8xf32>,
    %8 = vector.extract_strided_slice %3 {offsets = [0, 8], sizes = [32, 8], strides = [1, 1]} : vector<32x32xf32> to vector<32x8xf32>
    %c0_8 = arith.constant 0 : index
    %c1 = arith.constant 1 : index
    %c0_9 = arith.constant 0 : index
    %c0_10 = arith.constant 0 : index
    %9 = vector.load %arg3[%c0_8, %c1, %c0_9, %c0_10] : memref<1x4x32x8xf32, #tpu.memory_space<vmem>>, vector<1x1x32x8xf32>
    %10 = vector.shape_cast %9 : vector<1x1x32x8xf32> to vector<32x8xf32>
    %11 = vector.shape_cast %8 : vector<32x8xf32> to vector<1x1x32x8xf32>
    tpu.vector_store %arg3[%c0_8, %c1, %c0_9, %c0_10], %11 {strides = array<i32>} : memref<1x4x32x8xf32, #tpu.memory_space<vmem>>, vector<1x1x32x8xf32>,
    %12 = vector.extract_strided_slice %3 {offsets = [0, 16], sizes = [32, 8], strides = [1, 1]} : vector<32x32xf32> to vector<32x8xf32>
    %c0_11 = arith.constant 0 : index
    %c2 = arith.constant 2 : index
    %c0_12 = arith.constant 0 : index
    %c0_13 = arith.constant 0 : index
    %13 = vector.load %arg3[%c0_11, %c2, %c0_12, %c0_13] : memref<1x4x32x8xf32, #tpu.memory_space<vmem>>, vector<1x1x32x8xf32>
    %14 = vector.shape_cast %13 : vector<1x1x32x8xf32> to vector<32x8xf32>
    %15 = vector.shape_cast %12 : vector<32x8xf32> to vector<1x1x32x8xf32>
    tpu.vector_store %arg3[%c0_11, %c2, %c0_12, %c0_13], %15 {strides = array<i32>} : memref<1x4x32x8xf32, #tpu.memory_space<vmem>>, vector<1x1x32x8xf32>,
    %16 = vector.extract_strided_slice %3 {offsets = [0, 24], sizes = [32, 8], strides = [1, 1]} : vector<32x32xf32> to vector<32x8xf32>
    %c0_14 = arith.constant 0 : index
    %c3 = arith.constant 3 : index
    %c0_15 = arith.constant 0 : index
    %c0_16 = arith.constant 0 : index
    %17 = vector.load %arg3[%c0_14, %c3, %c0_15, %c0_16] : memref<1x4x32x8xf32, #tpu.memory_space<vmem>>, vector<1x1x32x8xf32>
    %18 = vector.shape_cast %17 : vector<1x1x32x8xf32> to vector<32x8xf32>
    %19 = vector.shape_cast %16 : vector<32x8xf32> to vector<1x1x32x8xf32>
    tpu.vector_store %arg3[%c0_14, %c3, %c0_15, %c0_16], %19 {strides = array<i32>} : memref<1x4x32x8xf32, #tpu.memory_space<vmem>>, vector<1x1x32x8xf32>,
    return
  }
  func.func @transform_0(%arg0: i32) -> (i32, i32, i32) {
    %c0_i32 = arith.constant 0 : i32
    %c0_i32_0 = arith.constant 0 : i32
    %c0_i32_1 = arith.constant 0 : i32
    return %arg0, %c0_i32, %c0_i32_0 : i32, i32, i32
  }
  func.func @transform_1(%arg0: i32) -> (i32, i32) {
    %c0_i32 = arith.constant 0 : i32
    %c0_i32_0 = arith.constant 0 : i32
    %c0_i32_1 = arith.constant 0 : i32
    return %c0_i32, %c0_i32_0 : i32, i32
  }
  func.func @transform_2(%arg0: i32) -> (i32, i32, i32, i32) {
    %c0_i32 = arith.constant 0 : i32
    %c0_i32_0 = arith.constant 0 : i32
    %c0_i32_1 = arith.constant 0 : i32
    %c0_i32_2 = arith.constant 0 : i32
    return %arg0, %c0_i32, %c0_i32_0, %c0_i32_1 : i32, i32, i32, i32
  }
}

</mosaic_0001>

<llo_original>
// kernel: tpu_custom_call.1
$region0: #{tpu_custom_call.1}
  #allocation0 [shape = 'u32[]', space=smem, size = 0x4, offset = 0x4, fixed_abs, tag = 'smem constant byte address 0x4 - core index']
  #allocation1 [shape = 'u32[72,128]{1,0:T(1,128)}', space=vmem, size = 0x9000, scoped, tag = 'internal scratch']
  %s0 = inlined_call_operand.hbm [shape: f32[2,32,32], index: 0, kind: input, shape index: {}]
  %s1 = inlined_call_operand.hbm [shape: f32[32,32], index: 1, kind: input, shape index: {}]
  %s2 = inlined_call_operand.vmem [shape: f32[2,4,32,8], index: 2, kind: output, shape index: {}]
  %s3 = sld [smem:[#allocation0]]
  $region49: #{tpu_custom_call.1} parent=0
    _
  %s5 = ssub.s32 1, %s3
  %s6 = scalar_select 0, %s5, %s3
  $region1: #{tpu_custom_call.1} parent=0
    #allocation2 [shape = 'u8[32768]{0}', space=vmem, size = 0x8000, scoped, tag = 'input window, operand 0']
    #allocation3 [shape = 's32[2]{0}', space=sflag, size = 0x8, scoped, tag = 'scoped memory for tpu_custom_call.1']
    #allocation4 [shape = 'u8[16384]{0}', space=vmem, size = 0x4000, scoped, tag = 'input window, operand 1, single buffered']
    #allocation5 [shape = 's32[1]{0}', space=sflag, size = 0x4, scoped, tag = 'scoped memory for tpu_custom_call.1']
    %7 = vsyncpa [#allocation3], 0
    %s8 = scalar_lea.sflag [#allocation3], 1
    %9 = vsyncpa %s8, 0
    %10 = vsyncpa [#allocation5], 0
    loop: start=0, step=1, limit=4
    $region2: #{tpu_custom_call.1} parent=1 // loop_pre_header
      _
    $region3: #{tpu_custom_call.1} parent=1 // loop_header
      %s12 = sphi 0, %s16
      %p13 = scmp.ge.s32.totalorder %s12, 4
      %s22 = sphi 0, %s24
      %s25 = sphi 0, %s22
      %s26 = sphi 0, %s25
      %s42 = sphi 0, %s26
      %s46 = sphi 0, %s46
      %s48 = sphi 0, %s46
      %s49 = sphi 0, %s48
      %s63 = sphi 0, %s49
      %s69 = sphi 0, %s71
      %s72 = sphi 0, %s69
      %s73 = sphi 0, %s72
      %s89 = sphi 0, %s73
    $region4: #{tpu_custom_call.1} parent=1 // loop_header_branch
      %15 = sbr.rel (%p13) target = $region8
    $region5: #{tpu_custom_call.1} parent=1 // loop_body
      %s17 = ssub.s32 %s12, 1
      %s18 = ssub.s32 %s12, 2
      %s19 = sadd.s32 %s12, 1
      %s20 = ssub.s32 %s12, %s19
      %p21 = scmp.eq.s32.totalorder %s20, 0
      %s23 = sadd.s32 %s22, 1
      %s24 = scalar_select %p21, %s22, %s23
      %p27 = pneg %p21
      %p28 = scmp.eq.s32.totalorder %s12, 1
      %p29 = por %p27, %p28
      %p30 = scmp.ne.s32.totalorder %s22, %s25
      %p31 = scmp.eq.s32.totalorder %s12, 0
      %p32 = por %p30, %p31
      %p33 = scmp.ne.s32.totalorder %s22, %s25
      %p34 = scmp.eq.s32.totalorder %s17, 1
      %p35 = por %p33, %p34
      %p36 = scmp.ne.s32.totalorder %s25, %s26
      %p37 = scmp.eq.s32.totalorder %s17, 0
      %p38 = por %p36, %p37
      %p39 = scmp.ne.s32.totalorder %s25, %s26
      %p40 = scmp.eq.s32.totalorder %s18, 1
      %p41 = por %p39, %p40
      %p43 = scmp.ne.s32.totalorder %s26, %s42
      %p44 = scmp.eq.s32.totalorder %s18, 0
      %p45 = por %p43, %p44
      %s47 = sadd.s32 %s46, 1
      %p50 = scmp.eq.s32.totalorder %s12, 1
      %p51 = scmp.ne.s32.totalorder %s46, %s48
      %p52 = scmp.eq.s32.totalorder %s12, 0
      %p53 = por %p51, %p52
      %p54 = scmp.ne.s32.totalorder %s46, %s48
      %p55 = scmp.eq.s32.totalorder %s17, 1
      %p56 = por %p54, %p55
      %p57 = scmp.ne.s32.totalorder %s48, %s49
      %p58 = scmp.eq.s32.totalorder %s17, 0
      %p59 = por %p57, %p58
      %p60 = scmp.ne.s32.totalorder %s48, %s49
      %p61 = scmp.eq.s32.totalorder %s18, 1
      %p62 = por %p60, %p61
      %p64 = scmp.ne.s32.totalorder %s49, %s63
      %p65 = scmp.eq.s32.totalorder %s18, 0
      %p66 = por %p64, %p65
      %s67 = ssub.s32 %s12, %s19
      %p68 = scmp.eq.s32.totalorder %s67, 0
      %s70 = sadd.s32 %s69, 1
      %s71 = scalar_select %p68, %s69, %s70
      %p74 = pneg %p68
      %p75 = scmp.eq.s32.totalorder %s12, 1
      %p76 = por %p74, %p75
      %p77 = scmp.ne.s32.totalorder %s69, %s72
      %p78 = scmp.eq.s32.totalorder %s12, 0
      %p79 = por %p77, %p78
      %p80 = scmp.ne.s32.totalorder %s69, %s72
      %p81 = scmp.eq.s32.totalorder %s17, 1
      %p82 = por %p80, %p81
      %p83 = scmp.ne.s32.totalorder %s72, %s73
      %p84 = scmp.eq.s32.totalorder %s17, 0
      %p85 = por %p83, %p84
      %p86 = scmp.ne.s32.totalorder %s72, %s73
      %p87 = scmp.eq.s32.totalorder %s18, 1
      %p88 = por %p86, %p87
      %p90 = scmp.ne.s32.totalorder %s73, %s89
      %p91 = scmp.eq.s32.totalorder %s18, 0
      %p92 = por %p90, %p91
      %p93 = scmp.le.s32.totalorder 1, %s12
      %p94 = scmp.lt.s32.totalorder %s12, 3
      %p95 = pnand %p93, %p94
      %p96 = pneg %p95
      // Predicated region
      $region9: #{tpu_custom_call.1} parent=5 // pred_check
        _
      $region10: #{tpu_custom_call.1} parent=5 // pred_check_branch
        %98 = sbr.rel (%p95) target = $region12
      $region11: #{tpu_custom_call.1} parent=5 // pred_region
        %s99 = ssub.s32 %s12, 1
        // Predicated region
        $region13: #{tpu_custom_call.1} parent=11 // pred_check
          %p100 = pneg %p59
        $region14: #{tpu_custom_call.1} parent=11 // pred_check_branch
          %102 = sbr.rel (%p100) target = $region16
        $region15: #{tpu_custom_call.1} parent=11 // pred_region
          %104 = vsyncadd [#allocation5], 0
          %s105 = sshll.u32 %s1, 4
          %s106 = int_to_ptr.hbm [resolvable:$true] %s105
          %s107 = sshll.u32 [#allocation4], 4
          %s108 = int_to_ptr.vmem [resolvable:$true] %s107
          %113 = dma.hbm_to_vmem [thread:$0]  %s106, 512, %s108, [#allocation5], 128, 128, 8
        $region16: #{tpu_custom_call.1} parent=11 // pred_fallthru
          _
      $region12: #{tpu_custom_call.1} parent=5 // pred_fallthru
        _
      %p114 = scmp.lt.s32.totalorder %s12, 2
      // Predicated region
      $region17: #{tpu_custom_call.1} parent=5 // pred_check
        %p115 = pneg %p114
      $region18: #{tpu_custom_call.1} parent=5 // pred_check_branch
        %117 = sbr.rel (%p115) target = $region20
      $region19: #{tpu_custom_call.1} parent=5 // pred_region
        // Predicated region
        $region21: #{tpu_custom_call.1} parent=19 // pred_check
          %p118 = pneg %p32
        $region22: #{tpu_custom_call.1} parent=19 // pred_check_branch
          %120 = sbr.rel (%p118) target = $region24
        $region23: #{tpu_custom_call.1} parent=19 // pred_region
          %s121 = sand.u32 %s22, 1
          %s122 = scalar_lea.sflag [#allocation3], %s121
          %s123 = sand.u32 %s22, 1
          %s124 = smul.addr %s123, 32
          %s125 = scalar_lea.vmem [#allocation2], %s124
          %127 = vsyncadd %s122, 0
          %s128 = smul.addr %s12, 4
          %s129 = smul.addr %s128, 8
          %s130 = scalar_lea.hbm %s0, %s129
          %s131 = sshll.u32 %s130, 4
          %s132 = int_to_ptr.hbm [resolvable:$true] %s131
          %s133 = sshll.u32 %s125, 4
          %s134 = int_to_ptr.vmem [resolvable:$true] %s133
          %139 = dma.hbm_to_vmem [thread:$0]  %s132, 512, %s134, %s122, 128, 128, 8
        $region24: #{tpu_custom_call.1} parent=19 // pred_fallthru
          _
      $region20: #{tpu_custom_call.1} parent=5 // pred_fallthru
        _
      %p140 = scmp.le.s32.totalorder 1, %s12
      %p141 = scmp.lt.s32.totalorder %s12, 3
      %p142 = pnand %p140, %p141
      %p143 = pneg %p142
      // Predicated region
      $region25: #{tpu_custom_call.1} parent=5 // pred_check
        _
      $region26: #{tpu_custom_call.1} parent=5 // pred_check_branch
        %145 = sbr.rel (%p142) target = $region28
      $region27: #{tpu_custom_call.1} parent=5 // pred_region
        %s146 = ssub.s32 %s12, 1
        %s147 = sand.u32 %s25, 1
        %s148 = scalar_lea.sflag [#allocation3], %s147
        %s149 = sand.u32 %s25, 1
        %s150 = smul.addr %s149, 32
        %s151 = scalar_lea.vmem [#allocation2], %s150
        // Predicated region
        $region29: #{tpu_custom_call.1} parent=27 // pred_check
          %p152 = pneg %p38
        $region30: #{tpu_custom_call.1} parent=27 // pred_check_branch
          %154 = sbr.rel (%p152) target = $region32
        $region31: #{tpu_custom_call.1} parent=27 // pred_region
          %156 = dma.done %s148, 512
        $region32: #{tpu_custom_call.1} parent=27 // pred_fallthru
          _
        // Predicated region
        $region33: #{tpu_custom_call.1} parent=27 // pred_check
          %p157 = pneg %p59
        $region34: #{tpu_custom_call.1} parent=27 // pred_check_branch
          %159 = sbr.rel (%p157) target = $region36
        $region35: #{tpu_custom_call.1} parent=27 // pred_region
          %161 = dma.done [#allocation5], 512
        $region36: #{tpu_custom_call.1} parent=27 // pred_fallthru
          _
        %s162 = sand.u32 %s25, 1
        %s163 = scalar_lea.sflag [#allocation3], %s162
        %s164 = sand.u32 %s25, 1
        %s165 = smul.addr %s164, 32
        %s166 = scalar_lea.vmem [#allocation2], %s165
        %p167 = pneg %p38
        %p168 = pneg %p35
        %p169 = pneg %p59
        %p170 = pneg %p56
        %p171 = pneg %p85
        %p172 = pneg %p82
        %p173 = scmp.lt.s32.totalorder %s17, 1
        %s174 = scalar_select %p173, %s17, 1
        %s175 = smul.addr %s174, 16
        %s176 = smul.addr %s175, 8
        %s177 = scalar_lea.vmem %s2, %s176
        %p178 = scmp.lt.s32.totalorder %s17, 1
        %s179 = scalar_select %p178, %s17, 1
        %s180 = smul.addr %s179, 16
        %s181 = smul.addr %s180, 8
        %s182 = scalar_lea.vmem %s2, %s181
        %v183 = vld [vmem:[%s151] sm:$0xff]
        %v184 = vld [vmem:[%s151 + $0x8] sm:$0xff]
        %v185 = vld [vmem:[%s151 + $0x10] sm:$0xff]
        %v186 = vld [vmem:[%s151 + $0x18] sm:$0xff]
        %v187 = vld [vmem:[#allocation4] sm:$0xff]
        %v188 = vld [vmem:[#allocation4 + $0x8] sm:$0xff]
        %v189 = vld [vmem:[#allocation4 + $0x10] sm:$0xff]
        %v190 = vld [vmem:[#allocation4 + $0x18] sm:$0xff]
        %vm191 = vcmask 261120
        %v193 = vsel %vm191, %v183, 0
        %v196 = vsel %vm191, %v184, 0
        %v199 = vsel %vm191, %v185, 0
        %v202 = vsel %vm191, %v186, 0
        %204 = vmatpush.msra.mxu0 0.0
        %205 = vmatpush.msra.mxu0 0.0
        %206 = vmatpush.msra.mxu0 0.0
        %207 = vmatpush.msra.mxu0 0.0
        %208 = vmatpush.msra.mxu0 0.0
        %209 = vmatpush.msra.mxu0 0.0
        %210 = vmatpush.msra.mxu0 0.0
        %211 = vmatpush.msra.mxu0 0.0
        %212 = vmatpush.msra.mxu0 0.0
        %213 = vmatpush.msra.mxu0 0.0
        %214 = vmatpush.msra.mxu0 0.0
        %215 = vmatpush.msra.mxu0 0.0
        %216 = vmatpush.msra.mxu0 %v190
        %217 = vmatpush.msra.mxu0 %v189
        %218 = vmatpush.msra.mxu0 %v188
        %219 = vmatpush.msra.mxu0 %v187
        %220 = vmatmul.f32.gmra.mxu0 %v193
        %v221 = vpop.f32.mrf.mxu0
        %v222 = vadd.f32 0.0, %v221
        %223 = vmatmul.f32.gmra.mxu0 %v196
        %v224 = vpop.f32.mrf.mxu0
        %v225 = vadd.f32 0.0, %v224
        %226 = vmatmul.f32.gmra.mxu0 %v199
        %v227 = vpop.f32.mrf.mxu0
        %v228 = vadd.f32 0.0, %v227
        %229 = vmatmul.f32.gmra.mxu0 %v202
        %v230 = vpop.f32.mrf.mxu0
        %v231 = vadd.f32 0.0, %v230
        %232 = vdwg.mxu0
        %vm233 = vcmask 64512
        %234 = vst.msk [vmem:[%s182] sm:$0xff] %vm233, %v222
        %235 = vst.msk [vmem:[%s182 + $0x8] sm:$0xff] %vm233, %v225
        %236 = vst.msk [vmem:[%s182 + $0x10] sm:$0xff] %vm233, %v228
        %237 = vst.msk [vmem:[%s182 + $0x18] sm:$0xff] %vm233, %v231
        %242 = vrot.lane.b32.xlu0 %v222, 120
        %v243 = vpop.permute.xlu0 %242
        %244 = vrot.lane.b32.xlu0 %v225, 120
        %v245 = vpop.permute.xlu0 %244
        %246 = vrot.lane.b32.xlu0 %v228, 120
        %v247 = vpop.permute.xlu0 %246
        %248 = vrot.lane.b32.xlu0 %v231, 120
        %v249 = vpop.permute.xlu0 %248
        %s254 = scalar_lea.vmem %s182, 32
        %255 = vst.msk [vmem:[%s254] sm:$0xff] %vm233, %v243
        %256 = vst.msk [vmem:[%s254 + $0x8] sm:$0xff] %vm233, %v245
        %257 = vst.msk [vmem:[%s254 + $0x10] sm:$0xff] %vm233, %v247
        %258 = vst.msk [vmem:[%s254 + $0x18] sm:$0xff] %vm233, %v249
        %259 = vrot.lane.b32.xlu0 %v222, 112
        %v260 = vpop.permute.xlu0 %259
        %261 = vrot.lane.b32.xlu0 %v225, 112
        %v262 = vpop.permute.xlu0 %261
        %263 = vrot.lane.b32.xlu0 %v228, 112
        %v264 = vpop.permute.xlu0 %263
        %265 = vrot.lane.b32.xlu0 %v231, 112
        %v266 = vpop.permute.xlu0 %265
        %s271 = scalar_lea.vmem %s182, 64
        %272 = vst.msk [vmem:[%s271] sm:$0xff] %vm233, %v260
        %273 = vst.msk [vmem:[%s271 + $0x8] sm:$0xff] %vm233, %v262
        %274 = vst.msk [vmem:[%s271 + $0x10] sm:$0xff] %vm233, %v264
        %275 = vst.msk [vmem:[%s271 + $0x18] sm:$0xff] %vm233, %v266
        %276 = vrot.lane.b32.xlu0 %v222, 104
        %v277 = vpop.permute.xlu0 %276
        %278 = vrot.lane.b32.xlu0 %v225, 104
        %v279 = vpop.permute.xlu0 %278
        %280 = vrot.lane.b32.xlu0 %v228, 104
        %v281 = vpop.permute.xlu0 %280
        %282 = vrot.lane.b32.xlu0 %v231, 104
        %v283 = vpop.permute.xlu0 %282
        %s288 = scalar_lea.vmem %s182, 96
        %289 = vst.msk [vmem:[%s288] sm:$0xff] %vm233, %v277
        %290 = vst.msk [vmem:[%s288 + $0x8] sm:$0xff] %vm233, %v279
        %291 = vst.msk [vmem:[%s288 + $0x10] sm:$0xff] %vm233, %v281
        %292 = vst.msk [vmem:[%s288 + $0x18] sm:$0xff] %vm233, %v283
        %p293 = scmp.lt.s32.totalorder %s17, 1
        %s294 = scalar_select %p293, %s17, 1
        %s295 = smul.addr %s294, 16
        %s296 = smul.addr %s295, 8
        %s297 = scalar_lea.vmem %s2, %s296
        // Predicated region
        $region37: #{tpu_custom_call.1} parent=27 // pred_check
          %p298 = pneg %p82
        $region38: #{tpu_custom_call.1} parent=27 // pred_check_branch
          %300 = sbr.rel (%p298) target = $region40
        $region39: #{tpu_custom_call.1} parent=27 // pred_region
          _
        $region40: #{tpu_custom_call.1} parent=27 // pred_fallthru
          _
      $region28: #{tpu_custom_call.1} parent=5 // pred_fallthru
        _
      %p301 = scmp.le.s32.totalorder 2, %s12
      // Predicated region
      $region41: #{tpu_custom_call.1} parent=5 // pred_check
        %p302 = pneg %p301
      $region42: #{tpu_custom_call.1} parent=5 // pred_check_branch
        %304 = sbr.rel (%p302) target = $region44
      $region43: #{tpu_custom_call.1} parent=5 // pred_region
        %s305 = ssub.s32 %s12, 2
        // Predicated region
        $region45: #{tpu_custom_call.1} parent=43 // pred_check
          %p306 = pneg %p88
        $region46: #{tpu_custom_call.1} parent=43 // pred_check_branch
          %308 = sbr.rel (%p306) target = $region48
        $region47: #{tpu_custom_call.1} parent=43 // pred_region
          %p309 = scmp.lt.s32.totalorder %s18, 1
          %s310 = scalar_select %p309, %s18, 1
          %s311 = smul.addr %s310, 16
          %s312 = smul.addr %s311, 8
          %s313 = scalar_lea.vmem %s2, %s312
        $region48: #{tpu_custom_call.1} parent=43 // pred_fallthru
          _
      $region44: #{tpu_custom_call.1} parent=5 // pred_fallthru
        _
    $region6: #{tpu_custom_call.1} parent=1 // loop_footer
      %s16 = sadd.s32 1, %s12
    $region7: #{tpu_custom_call.1} parent=1 // loop_footer_branch
      %11 = sbr.rel target = $region3
    $region8: #{tpu_custom_call.1} parent=1 // loop_exit
      _
    %314 = vsyncpa [#allocation3], 1
    %s315 = scalar_lea.sflag [#allocation3], 1
    %316 = vsyncpa %s315, 1
    %317 = vsyncpa [#allocation5], 1

</llo_original>
